<compile_context>
chip_gen: v6e
topology: v6e:2x2x1
jax: 0.10.0
libtpu: 0.0.40
codegen_flags: <defaults>
</compile_context>

<pallas_src>
import jax
import jax.numpy as jnp
from jax.experimental import pallas as pl
from jax.experimental.pallas import tpu as pltpu


def _round_up(x, m):
    return ((x + m - 1) // m) * m


# --------------------------------------------------------------------------- #
# One-time capability probes (cached; evaluated eagerly even under an outer jit)
# --------------------------------------------------------------------------- #
_BITCAST_OK = None


def _complex_bitcast_supported():
    """True if lax.bitcast_convert_type reinterprets complex64 <-> f32[...,2]."""
    global _BITCAST_OK
    if _BITCAST_OK is None:
        try:
            with jax.ensure_compile_time_eval():
                z = jnp.array([1.0 + 2.0j], dtype=jnp.complex64)
                w = jax.lax.bitcast_convert_type(z, jnp.float32)
                ok = (w.shape == (1, 2)
                      and abs(float(w[0, 0]) - 1.0) < 1e-6
                      and abs(float(w[0, 1]) - 2.0) < 1e-6)
                if ok:
                    zz = jax.lax.bitcast_convert_type(w, jnp.complex64)
                    ok = abs(complex(zz[0]) - (1.0 + 2.0j)) < 1e-6
                _BITCAST_OK = bool(ok)
        except Exception:
            _BITCAST_OK = False
    return _BITCAST_OK


_ROLL_PLUS1_IS_PREV = None


def _roll_plus1_is_prev():
    """True if pltpu.roll(x, 1, lane_axis)[..., l] == x[..., l-1] (jnp.roll conv)."""
    global _ROLL_PLUS1_IS_PREV
    if _ROLL_PLUS1_IS_PREV is None:
        def probe(x_ref, o_ref):
            o_ref[...] = pltpu.roll(x_ref[...], shift=1, axis=1)

        with jax.ensure_compile_time_eval():
            x = jnp.broadcast_to(
                jnp.arange(128, dtype=jnp.float32)[None, :], (8, 128))
            y = pl.pallas_call(
                probe,
                out_shape=jax.ShapeDtypeStruct((8, 128), jnp.float32))(x)
            _ROLL_PLUS1_IS_PREV = bool(float(y[0, 0]) > 64.0)
    return _ROLL_PLUS1_IS_PREV


# --------------------------------------------------------------------------- #
# Kernel: apply the composed 2x2 batched unitary to one state tile.
#   u_ref : (8, TL)            rows 0..3 = "direct" coeff Re(U[a,c]) duplicated
#                              per (re,im) lane pair; rows 4..7 = "swap" coeff
#                              (-Im(U[a,c]) on even lanes, +Im on odd lanes).
#   s_ref : (TPre, 2, TP, TL)  state tile, complex interleaved on the lane axis
#   o_ref : (TPre, 2, TP, TL)  output tile, same layout
# --------------------------------------------------------------------------- #
def _make_composed_gate_kernel(plus1_is_prev):
    def kernel(u_ref, s_ref, o_ref):
        tl = s_ref.shape[3]
        # non-negative static rotate amounts, valid under either roll convention
        if plus1_is_prev:
            prev_sh, next_sh = 1, tl - 1
        else:
            prev_sh, next_sh = tl - 1, 1

        u = u_ref[...]                                  # (8, TL)

        slice_shape = (s_ref.shape[0], 1, s_ref.shape[2], tl)
        lane = jax.lax.broadcasted_iota(jnp.int32, slice_shape, 3)
        even = (lane & 1) == 0

        def cswap(x):
            # per complex pair (even, odd) lane swap: (re, im) -> (im, re).
            # pairs never straddle a lane tile (TL is even), so wrap-around
            # values are exactly the ones discarded by the select.
            return jnp.where(even,
                             pltpu.roll(x, shift=next_sh, axis=3),
                             pltpu.roll(x, shift=prev_sh, axis=3))

        def urow(r):
            return u[r][None, None, None, :]            # (1,1,1,TL)

        s0 = s_ref[:, 0:1, :, :]                        # (TPre,1,TP,TL)
        s1 = s_ref[:, 1:2, :, :]
        s0w = cswap(s0)
        s1w = cswap(s1)

        for a in range(2):                              # unrolled: 2 output rows
            out = (urow(2 * a + 0) * s0 + urow(4 + 2 * a + 0) * s0w
                   + urow(2 * a + 1) * s1 + urow(4 + 2 * a + 1) * s1w)
            o_ref[:, a:a + 1, :, :] = out

    return kernel


# --------------------------------------------------------------------------- #
# Helpers mirroring PyQComposedBlock.unitary()
# --------------------------------------------------------------------------- #
def _expand_mat(m, batch):
    m = m.astype(jnp.complex64)
    if m.ndim == 2:
        return jnp.broadcast_to(m[:, :, None], (2, 2, batch))
    if m.shape == (2, 2, batch):
        return m
    if m.shape[:2] != (2, 2) or m.shape[-1] != 1:
        raise ValueError(
            f"cannot expand unitary of shape {m.shape} to batch size {batch}")
    return jnp.broadcast_to(m, (2, 2, batch))


def _compose_unitaries(op_unitaries, batch):
    """reduce(bmm, reversed(ops)):  U = U_{K-1} @ ... @ U_0, batched over B."""
    mats = [_expand_mat(m, batch) for m in op_unitaries]
    u = mats[-1]
    for k in range(len(mats) - 2, -1, -1):
        u = jnp.einsum("ijb,jkb->ikb", u, mats[k])
    return u                                            # (2, 2, B) complex64


# --------------------------------------------------------------------------- #
# Forward pass
# --------------------------------------------------------------------------- #
def pyq_composed_block_forward(op_unitaries, state, qubits, n_qubits):
    """op_unitaries: list of complex (2,2) or (2,2,batch) arrays, circuit order.
    state: complex64 array of shape (2,)*n_qubits + (batch,)."""
    if len(op_unitaries) == 0:
        raise ValueError("PyQComposedBlock requires at least one operation")
    if len(qubits) != 1:
        raise ValueError("composed block acts on a single target qubit")

    batch = state.shape[-1]
    q = qubits[0]
    pre = 2 ** q
    post = 2 ** (n_qubits - q - 1)
    two_b = 2 * batch

    # ---- compose U once (tiny: K batched 2x2 complex matmuls, pure JAX) ------
    u = _compose_unitaries(op_unitaries, batch)          # (2,2,B) complex64

    # ---- lane layout: fold part of `post` into the lane axis when the batch
    #      alone is lane-sparse (2B < 128).  Free contiguous reshape.
    f = 1
    if two_b < 128 and post > 1:
        while f < post and f * two_b < 256 and (post // f) > 8:
            f *= 2
        while f < post and f * two_b < 128:
            f *= 2
        while f > 1 and f * two_b > 16384:
            f //= 2
    L = f * two_b
    p2 = post // f
    # TODO(synk): for post < 8 with large batch (target qubit near the last
    # qubit) a sublane-fused (pre, 2*post, 2B) layout would avoid the 8/post
    # sublane padding; the padded-tile accounting below keeps it correct.

    # ---- interleaved f32 view of the state (re, im on adjacent lanes) --------
    s4 = state.astype(jnp.complex64).reshape(pre, 2, post, batch)
    if _complex_bitcast_supported():
        sf = jax.lax.bitcast_convert_type(s4, jnp.float32)      # zero-copy
    else:
        # fallback: single fused conversion pass, same interleaved layout
        sf = jnp.stack([jnp.real(s4), jnp.imag(s4)], axis=-1).astype(jnp.float32)
    sf = sf.reshape(pre, 2, p2, L)                              # free reshape

    # ---- packed unitary coefficients, (8, L) f32 (tiny) ----------------------
    ur = jnp.real(u).astype(jnp.float32)                        # (2,2,B)
    ui = jnp.imag(u).astype(jnp.float32)
    u_dir = jnp.stack([ur, ur], axis=-1).reshape(2, 2, two_b)   # Re per lane pair
    u_swp = jnp.stack([-ui, ui], axis=-1).reshape(2, 2, two_b)  # -Im / +Im
    if f > 1:
        u_dir = jnp.tile(u_dir, (1, 1, f))
        u_swp = jnp.tile(u_swp, (1, 1, f))
    u_packed = jnp.concatenate(
        [u_dir.reshape(4, L), u_swp.reshape(4, L)], axis=0)     # (8, L)

    # ---- generation-aware VMEM budget / TensorCore count ---------------------
    phys_vmem = 64 * 1024 * 1024
    try:
        phys_vmem = int(pltpu.get_tpu_info().vmem_capacity_bytes)
    except Exception:
        pass
    if phys_vmem >= 100 * 1024 * 1024:      # v5e / v6e: 128 MiB VMEM, 1 TC
        tile_budget, vmem_cap, num_cores = 32 << 20, 64 << 20, 1
    else:                                   # v7x-like: 64 MiB VMEM, 2 TCs
        tile_budget, vmem_cap, num_cores = 14 << 20, 36 << 20, 2

    # ---- tile selection with (8,128)-padded VMEM accounting ------------------
    def blk_bytes(tpre_, tp_, tl_):
        return tpre_ * 2 * _round_up(tp_, 8) * _round_up(tl_, 128) * 4

    def vmem_use(tpre_, tp_, tl_):
        # in + out blocks, double buffered, plus the double-buffered u rows
        return 4 * blk_bytes(tpre_, tp_, tl_) + 2 * 8 * _round_up(tl_, 128) * 4

    tpre, tp, tl = pre, p2, L
    while tpre > 1 and vmem_use(tpre, tp, tl) > tile_budget:
        tpre //= 2
    while tp % 16 == 0 and vmem_use(tpre, tp, tl) > tile_budget:
        tp //= 2
    while tl % 256 == 0 and vmem_use(tpre, tp, tl) > tile_budget:
        tl //= 2                             # lane (batch) tiling for huge batch

    # ---- grid parallelism: >=2 points for DMA/compute overlap on 1-TC parts,
    #      >=4 points on 2-TC parts; prefer splitting the contiguous pre axis.
    target_points = 2 * num_cores

    def points(tpre_, tp_, tl_):
        return (pre // tpre_) * (p2 // tp_) * (L // tl_)

    while tpre > 1 and points(tpre, tp, tl) < target_points:
        tpre //= 2
    if num_cores > 1:
        while tp % 16 == 0 and points(tpre, tp, tl) < target_points:
            tp //= 2
        while tl % 256 == 0 and tl > 256 and points(tpre, tp, tl) < target_points:
            tl //= 2

    grid = (pre // tpre, p2 // tp, L // tl)
    vmem_limit = int(min(max(vmem_use(tpre, tp, tl) + (1 << 20), 8 << 20),
                         vmem_cap))

    u_spec = pl.BlockSpec((8, tl), lambda i, j, k: (0, k))
    in_spec = pl.BlockSpec((tpre, 2, tp, tl), lambda i, j, k: (i, 0, j, k))
    out_spec = pl.BlockSpec((tpre, 2, tp, tl), lambda i, j, k: (i, 0, j, k))

    total_f32 = pre * 2 * p2 * L
    cost = pl.CostEstimate(flops=8 * total_f32, transcendentals=0,
                           bytes_accessed=2 * total_f32 * 4 + 2 * 8 * L * 4)

    kernel = _make_composed_gate_kernel(_roll_plus1_is_prev())

    out_f = pl.pallas_call(
        kernel,
        out_shape=jax.ShapeDtypeStruct((pre, 2, p2, L), jnp.float32),
        grid=grid,
        in_specs=[u_spec, in_spec],
        out_specs=out_spec,
        compiler_params=pltpu.CompilerParams(
            dimension_semantics=("parallel", "parallel", "parallel"),
            vmem_limit_bytes=vmem_limit),
        cost_estimate=cost,
    )(u_packed, sf)

    # ---- back to complex64 ----------------------------------------------------
    out_f = out_f.reshape(pre, 2, post, batch, 2)
    if _complex_bitcast_supported():
        out = jax.lax.bitcast_convert_type(out_f, jnp.complex64)
    else:
        out = jax.lax.complex(out_f[..., 0], out_f[..., 1])
    return out.reshape(state.shape)


# ------------------------- pure-JAX reference ------------------------------ #
def _reference_forward(op_unitaries, state, qubits, n_qubits):
    batch = state.shape[-1]
    u = _compose_unitaries(op_unitaries, batch)
    q = qubits[0]
    pre = 2 ** q
    post = 2 ** (n_qubits - q - 1)
    s = state.reshape(pre, 2, post, batch)
    out = jnp.einsum("acb,pcrb->parb", u, s)
    return out.reshape(state.shape)


# -------------------------- synthetic single-qubit ops ---------------------- #
def _rx_unitary(theta):
    c = jnp.cos(theta / 2).astype(jnp.complex64)
    s = (-1j * jnp.sin(theta / 2)).astype(jnp.complex64)
    return jnp.stack([jnp.stack([c, s]), jnp.stack([s, c])])          # (2,2,B)


def _rz_unitary(phi):
    e0 = jnp.exp(-0.5j * phi).astype(jnp.complex64)
    e1 = jnp.exp(0.5j * phi).astype(jnp.complex64)
    z = jnp.zeros_like(e0)
    return jnp.stack([jnp.stack([e0, z]), jnp.stack([z, e1])])        # (2,2,B)


def _h_unitary():
    h = (1.0 / jnp.sqrt(2.0)).astype(jnp.float32)
    return jnp.array([[h, h], [h, -h]], dtype=jnp.complex64)          # (2,2)


if __name__ == "__main__":
    n_qubits = 7
    batch = 128
    qubits = (3,)

    key = jax.random.PRNGKey(0)
    k1, k2, k3, k4 = jax.random.split(key, 4)

    # deterministic "parameter values" (play the role of the `values` dict)
    theta = jax.random.uniform(k1, (batch,), jnp.float32, 0.0, 2.0)
    phi = jax.random.uniform(k2, (batch,), jnp.float32, 0.0, 2.0)

    # chain of single-qubit ops on the same qubit: RX(theta) -> H -> RZ(phi)
    op_unitaries = [_rx_unitary(theta), _h_unitary(), _rz_unitary(phi)]

    # random normalized batched state, shape (2,)*n_qubits + (batch,)
    sshape = (2,) * n_qubits + (batch,)
    sr = jax.random.normal(k3, sshape, jnp.float32)
    si = jax.random.normal(k4, sshape, jnp.float32)
    state = (sr + 1j * si).astype(jnp.complex64)
    norm = jnp.sqrt(jnp.sum(jnp.abs(state) ** 2, axis=tuple(range(n_qubits)),
                            keepdims=True))
    state = state / norm

    out = pyq_composed_block_forward(op_unitaries, state, qubits, n_qubits)
    out = jax.block_until_ready(out)

    ref = _reference_forward(op_unitaries, state, qubits, n_qubits)
    assert out.shape == state.shape and out.dtype == jnp.complex64
    assert jnp.allclose(out, ref, atol=1e-5, rtol=1e-5), "kernel mismatch vs reference"

    print("KERNEL_OK")
</pallas_src>

<mosaic_0001>
module attributes {stable_mosaic.version = 11 : i64} {
  func.func @probe(%arg0: memref<8x128xf32, #tpu.memory_space<vmem>>, %arg1: memref<8x128xf32, #tpu.memory_space<vmem>>) attributes {dimension_semantics = [], scalar_prefetch = 0 : i64, scratch_operands = 0 : i64, tpu.core_type = #tpu.core_type<tc>} {
    %c0 = arith.constant 0 : index
    %c0_0 = arith.constant 0 : index
    %0 = vector.load %arg0[%c0, %c0_0] : memref<8x128xf32, #tpu.memory_space<vmem>>, vector<8x128xf32>
    %c1_i32 = arith.constant 1 : i32
    %1 = tpu.dynamic_rotate %0 by %c1_i32 dim 1 : vector<8x128xf32>, i32 -> vector<8x128xf32>
    %c0_1 = arith.constant 0 : index
    %c0_2 = arith.constant 0 : index
    %2 = vector.load %arg1[%c0_1, %c0_2] : memref<8x128xf32, #tpu.memory_space<vmem>>, vector<8x128xf32>
    tpu.vector_store %arg1[%c0_1, %c0_2], %1 {strides = array<i32>} : memref<8x128xf32, #tpu.memory_space<vmem>>, vector<8x128xf32>,
    return
  }
}

</mosaic_0001>

<llo_original>
// kernel: tpu_custom_call.1
$region0: #{tpu_custom_call.1}
  #allocation0 [shape = 'u32[]', space=smem, size = 0x4, offset = 0x4, fixed_abs, tag = 'smem constant byte address 0x4 - core index']
  #allocation1 [shape = 'u32[144,128]{1,0:T(1,128)}', space=vmem, size = 0x12000, scoped, tag = 'internal scratch']
  %s0 = inlined_call_operand.hbm [shape: f32[8,128], index: 0, kind: input, shape index: {}]
  %s1 = inlined_call_operand.hbm [shape: f32[8,128], index: 1, kind: output, shape index: {}]
  %s2 = sld [smem:[#allocation0]]
  $region18: #{tpu_custom_call.1} parent=0
    _
  %s4 = ssub.s32 1, %s2
  %s5 = scalar_select 0, %s4, %s2
  $region1: #{tpu_custom_call.1} parent=0
    #allocation2 [shape = 'u8[4096]{0}', space=vmem, size = 0x1000, scoped, tag = 'input window, operand 0, single buffered']
    #allocation3 [shape = 's32[1]{0}', space=sflag, size = 0x4, scoped, tag = 'scoped memory for tpu_custom_call.1']
    #allocation4 [shape = 's32[1]{0}', space=sflag, size = 0x4, scoped, tag = 'scoped memory for tpu_custom_call.1']
    #allocation5 [shape = 'u8[4096]{0}', space=vmem, size = 0x1000, scoped, tag = 'output window, operand 0, single buffered']
    %6 = vsyncpa [#allocation3], 0
    %7 = vsyncpa [#allocation4], 0
    // Predicated region
    $region2: #{tpu_custom_call.1} parent=1 // pred_check
      _
    $region3: #{tpu_custom_call.1} parent=1 // pred_check_branch
      %9 = sbr.rel (0) target = $region5
    $region4: #{tpu_custom_call.1} parent=1 // pred_region
      %s11 = ssub.s32 128, 128
      %12 = vsyncadd [#allocation3], %s11
      %s14 = sshll.u32 [#allocation2], 4
      %s15 = int_to_ptr.vmem [resolvable:$true] %s14
      %17 = dma.hbm_to_vmem [thread:$0]  %s0, 128, %s15, [#allocation3]
    $region5: #{tpu_custom_call.1} parent=1 // pred_fallthru
      _
    // Predicated region
    $region6: #{tpu_custom_call.1} parent=1 // pred_check
      _
    $region7: #{tpu_custom_call.1} parent=1 // pred_check_branch
      %19 = sbr.rel (0) target = $region9
    $region8: #{tpu_custom_call.1} parent=1 // pred_region
      %20 = dma.done [#allocation3], 128
    $region9: #{tpu_custom_call.1} parent=1 // pred_fallthru
      _
    %v21 = vld [vmem:[#allocation2] sm:$0xff]
    %22 = vrot.lane.b32.xlu0 %v21, 1
    %v23 = vpop.permute.xlu0 %22
    %24 = vst [vmem:[#allocation5] sm:$0xff] %v23
    // Predicated region
    $region10: #{tpu_custom_call.1} parent=1 // pred_check
      _
    $region11: #{tpu_custom_call.1} parent=1 // pred_check_branch
      %26 = sbr.rel (0) target = $region13
    $region12: #{tpu_custom_call.1} parent=1 // pred_region
      %s28 = ssub.s32 128, 128
      %29 = vsyncadd [#allocation4], %s28
      %s31 = sshll.u32 [#allocation5], 4
      %s32 = int_to_ptr.vmem [resolvable:$true] %s31
      %34 = dma.vmem_to_hbm [thread:$0]  %s32, 128, %s1, [#allocation4]
    $region13: #{tpu_custom_call.1} parent=1 // pred_fallthru
      _
    // Predicated region
    $region14: #{tpu_custom_call.1} parent=1 // pred_check
      _
    $region15: #{tpu_custom_call.1} parent=1 // pred_check_branch
      %36 = sbr.rel (0) target = $region17
    $region16: #{tpu_custom_call.1} parent=1 // pred_region
      %37 = dma.done [#allocation4], 128
    $region17: #{tpu_custom_call.1} parent=1 // pred_fallthru
      _
    %38 = vsyncpa [#allocation3], 1
    %39 = vsyncpa [#allocation4], 1

</llo_original>
